<compile_context>
chip_gen: v7x
topology: tpu7x:2x2x1
jax: 0.10.0
libtpu: 0.0.40
codegen_flags: <defaults>
</compile_context>

<pallas_src>
import functools

import jax
import jax.numpy as jnp
from jax.experimental import pallas as pl
from jax.experimental.pallas import tpu as pltpu


# ------------------------------------------------------------------ helpers

def _round_up(x: int, m: int) -> int:
    return ((x + m - 1) // m) * m


def _apply_act(x, act: str):
    if act in ("gelu", "gelu_new", "gelu_fast"):
        return jax.nn.gelu(x, approximate=True)
    if act == "relu":
        return jnp.maximum(x, 0.0)
    if act in ("silu", "swish"):
        return x * jax.nn.sigmoid(x)
    if act == "tanh":
        return jnp.tanh(x)
    if act == "sigmoid":
        return jax.nn.sigmoid(x)
    raise ValueError(f"unsupported activation: {act}")


def _mix32(x):
    """splitmix32-style avalanche on uint32 (pure jnp; wraps mod 2^32)."""
    x = (x ^ (x >> jnp.uint32(16))) * jnp.uint32(0x7FEB352D)
    x = (x ^ (x >> jnp.uint32(15))) * jnp.uint32(0x846CA68B)
    x = x ^ (x >> jnp.uint32(16))
    return x


def _drop_threshold_u32(drop_prob: float):
    return jnp.uint32(min(int(round(drop_prob * 4294967296.0)), 4294967295))


def _layer_norm(v, gamma, beta, eps):
    mean = jnp.mean(v, axis=-1, keepdims=True)
    c = v - mean
    var = jnp.mean(c * c, axis=-1, keepdims=True)
    inv = jax.lax.rsqrt(var + jnp.float32(eps))
    return c * inv * gamma + beta


# ------------------------------------------------------------------ kernel

def _pffn_kernel(seed_ref, x_ref, w1_ref, b1_ref, w2_ref, g_ref, beta_ref,
                 pre_ref, out_ref, *,
                 drop_prob: float, training: bool, act: str,
                 identity_preserving_norm: bool, eps: float,
                 tile_rows: int, d_inner: int):
    x = x_ref[...].astype(jnp.float32)                              # (TM, d_model)

    # linear_1 + bias + activation
    h = jnp.dot(x, w1_ref[...].astype(jnp.float32),
                preferred_element_type=jnp.float32)
    h = h + b1_ref[...].astype(jnp.float32)                         # (TM, d_inner)
    h = _apply_act(h, act)

    # XDropout (training only): drop where hash-bits < p * 2^32, scale survivors.
    if training and drop_prob > 0.0:
        seed = seed_ref[0].astype(jnp.uint32) * jnp.uint32(0x9E3779B9)
        tile = pl.program_id(0).astype(jnp.uint32)
        row = (jax.lax.broadcasted_iota(jnp.int32, h.shape, 0).astype(jnp.uint32)
               + tile * jnp.uint32(tile_rows))
        col = jax.lax.broadcasted_iota(jnp.int32, h.shape, 1).astype(jnp.uint32)
        idx = row * jnp.uint32(d_inner) + col
        bits = _mix32(idx ^ seed)
        keep = bits >= _drop_threshold_u32(drop_prob)
        scale = jnp.float32(1.0 / (1.0 - drop_prob))
        h = jnp.where(keep, h, jnp.float32(0.0)) * scale

    # linear_2 (no bias)
    ffn = jnp.dot(h, w2_ref[...].astype(jnp.float32),
                  preferred_element_type=jnp.float32)               # (TM, d_model)

    gamma = g_ref[...].astype(jnp.float32)
    beta = beta_ref[...].astype(jnp.float32)

    if identity_preserving_norm:
        ln = _layer_norm(ffn, gamma, beta, eps)
        pre_ref[...] = ln.astype(pre_ref.dtype)
        out_ref[...] = (x + ln).astype(out_ref.dtype)
    else:
        pre_ref[...] = ffn.astype(pre_ref.dtype)
        out_ref[...] = _layer_norm(x + ffn, gamma, beta, eps).astype(out_ref.dtype)


# ------------------------------------------------------------------ wrapper

def positionwise_ffn_forward(hidden, params, *,
                             drop_prob: float = 0.0, training: bool = False,
                             seed: int = 0, hidden_act: str = "gelu",
                             identity_preserving_norm: bool = True,
                             layer_norm_eps: float = 1e-6,
                             block_rows: int = 512):
    """Forward pass of PositionwiseFFN (groups==1, ffn_layers==0, no dim_match).

    Returns (pre_ffn, out), both with hidden's shape/dtype.
    """
    orig_shape = hidden.shape
    d_model = orig_shape[-1]
    x2d = hidden.reshape(-1, d_model)
    rows = x2d.shape[0]
    d_inner = params["w1"].shape[1]
    assert params["w1"].shape[0] == d_model
    assert params["w2"].shape == (d_inner, d_model)

    # Row tiling: sublane-multiple tile, pad rows so the grid divides evenly.
    tm = min(block_rows, _round_up(rows, 8))
    rows_p = _round_up(rows, tm)
    if rows_p != rows:
        x2d = jnp.pad(x2d, ((0, rows_p - rows), (0, 0)))
    grid = (rows_p // tm,)

    seed_arr = jnp.asarray([seed], dtype=jnp.int32)
    w1 = params["w1"]
    b1 = params["b1"].reshape(1, d_inner)
    w2 = params["w2"]
    gamma = params["gamma"].reshape(1, d_model)
    beta = params["beta"].reshape(1, d_model)

    kernel = functools.partial(
        _pffn_kernel,
        drop_prob=float(drop_prob), training=bool(training), act=hidden_act,
        identity_preserving_norm=bool(identity_preserving_norm),
        eps=float(layer_norm_eps), tile_rows=tm, d_inner=d_inner)

    pre2d, out2d = pl.pallas_call(
        kernel,
        out_shape=(jax.ShapeDtypeStruct((rows_p, d_model), hidden.dtype),
                   jax.ShapeDtypeStruct((rows_p, d_model), hidden.dtype)),
        grid=grid,
        in_specs=[
            pl.BlockSpec(memory_space=pltpu.MemorySpace.SMEM),       # seed scalar
            pl.BlockSpec((tm, d_model), lambda i: (i, 0)),           # hidden row tile
            pl.BlockSpec((d_model, d_inner), lambda i: (0, 0)),      # W1 (resident)
            pl.BlockSpec((1, d_inner), lambda i: (0, 0)),            # b1
            pl.BlockSpec((d_inner, d_model), lambda i: (0, 0)),      # W2 (resident)
            pl.BlockSpec((1, d_model), lambda i: (0, 0)),            # LN gamma
            pl.BlockSpec((1, d_model), lambda i: (0, 0)),            # LN beta
        ],
        out_specs=(pl.BlockSpec((tm, d_model), lambda i: (i, 0)),
                   pl.BlockSpec((tm, d_model), lambda i: (i, 0))),
        compiler_params=pltpu.CompilerParams(
            dimension_semantics=("parallel",),        # shard tiles across TCs (v7x)
            vmem_limit_bytes=48 * 1024 * 1024,        # fits v7x's 64 MiB physical VMEM
        ),
    )(seed_arr, x2d, w1, b1, w2, gamma, beta)

    pre = pre2d[:rows].reshape(orig_shape)
    out = out2d[:rows].reshape(orig_shape)
    return pre, out


# ------------------------------------------------------------------ pure-JAX reference

def _reference_forward(hidden, params, *, drop_prob, training, seed, hidden_act,
                       identity_preserving_norm, layer_norm_eps):
    orig_shape = hidden.shape
    d_model = orig_shape[-1]
    x = hidden.reshape(-1, d_model).astype(jnp.float32)
    w1 = params["w1"].astype(jnp.float32)
    b1 = params["b1"].reshape(1, -1).astype(jnp.float32)
    w2 = params["w2"].astype(jnp.float32)
    gamma = params["gamma"].reshape(1, -1).astype(jnp.float32)
    beta = params["beta"].reshape(1, -1).astype(jnp.float32)

    hp = jax.lax.Precision.HIGHEST
    h = jnp.dot(x, w1, precision=hp) + b1
    h = _apply_act(h, hidden_act)
    if training and drop_prob > 0.0:
        d_inner = h.shape[1]
        row = jax.lax.broadcasted_iota(jnp.int32, h.shape, 0).astype(jnp.uint32)
        col = jax.lax.broadcasted_iota(jnp.int32, h.shape, 1).astype(jnp.uint32)
        idx = row * jnp.uint32(d_inner) + col
        bits = _mix32(idx ^ (jnp.uint32(seed) * jnp.uint32(0x9E3779B9)))
        keep = bits >= _drop_threshold_u32(drop_prob)
        h = jnp.where(keep, h, 0.0) * jnp.float32(1.0 / (1.0 - drop_prob))
    ffn = jnp.dot(h, w2, precision=hp)

    if identity_preserving_norm:
        ln = _layer_norm(ffn, gamma, beta, layer_norm_eps)
        pre, out = ln, x + ln
    else:
        pre, out = ffn, _layer_norm(x + ffn, gamma, beta, layer_norm_eps)
    return (pre.astype(hidden.dtype).reshape(orig_shape),
            out.astype(hidden.dtype).reshape(orig_shape))


# ------------------------------------------------------------------ demo / check

if __name__ == "__main__":
    key = jax.random.PRNGKey(0)
    batch, seq, d_model, ffn_width = 2, 8, 32, 4
    d_inner = d_model * ffn_width

    k0, k1, k2, k3, k4, k5 = jax.random.split(key, 6)
    hidden = jax.random.normal(k0, (batch, seq, d_model), dtype=jnp.float32)
    params = {
        "w1": jax.random.normal(k1, (d_model, d_inner), jnp.float32) * (d_model ** -0.5),
        "b1": jax.random.normal(k2, (d_inner,), jnp.float32) * 0.1,
        "w2": jax.random.normal(k3, (d_inner, d_model), jnp.float32) * (d_inner ** -0.5),
        "gamma": 1.0 + 0.1 * jax.random.normal(k4, (d_model,), jnp.float32),
        "beta": 0.1 * jax.random.normal(k5, (d_model,), jnp.float32),
    }

    def _check(a, b, name):
        if not bool(jnp.allclose(a, b, rtol=2e-2, atol=2e-2)):
            raise AssertionError(f"mismatch in {name}: "
                                 f"max abs err {float(jnp.max(jnp.abs(a - b)))}")

    # Eval path (dropout inactive), post-LN residual branch.
    kw_eval = dict(drop_prob=0.1, training=False, seed=0, hidden_act="gelu",
                   identity_preserving_norm=False, layer_norm_eps=1e-6)
    pre_e, out_e = positionwise_ffn_forward(hidden, params, **kw_eval)
    jax.block_until_ready(out_e)
    pre_er, out_er = _reference_forward(hidden, params, **kw_eval)
    _check(pre_e, pre_er, "pre_ffn (eval)")
    _check(out_e, out_er, "out (eval)")

    # Training path (dropout active), identity-preserving-norm branch.
    kw_train = dict(drop_prob=0.1, training=True, seed=123, hidden_act="gelu",
                    identity_preserving_norm=True, layer_norm_eps=1e-6)
    pre_t, out_t = positionwise_ffn_forward(hidden, params, **kw_train)
    jax.block_until_ready(out_t)
    pre_tr, out_tr = _reference_forward(hidden, params, **kw_train)
    _check(pre_t, pre_tr, "pre_ffn (train)")
    _check(out_t, out_tr, "out (train)")

    print("KERNEL_OK")
</pallas_src>

<mosaic_0001>
module attributes {stable_mosaic.version = 11 : i64} {
  func.func @_pffn_kernel(%arg0: i32, %arg1: memref<1xi32, #tpu.memory_space<smem>>, %arg2: memref<16x32xf32, #tpu.memory_space<vmem>>, %arg3: memref<32x128xf32, #tpu.memory_space<vmem>>, %arg4: memref<1x128xf32, #tpu.memory_space<vmem>>, %arg5: memref<128x32xf32, #tpu.memory_space<vmem>>, %arg6: memref<1x32xf32, #tpu.memory_space<vmem>>, %arg7: memref<1x32xf32, #tpu.memory_space<vmem>>, %arg8: memref<16x32xf32, #tpu.memory_space<vmem>>, %arg9: memref<16x32xf32, #tpu.memory_space<vmem>>) attributes {dimension_semantics = [#tpu.dimension_semantics<parallel>], iteration_bounds = array<i64: 1>, scalar_prefetch = 0 : i64, scratch_operands = 0 : i64, tpu.core_type = #tpu.core_type<tc>, window_params = [{transform_indices = @transform_0, window_bounds = array<i64: 1>}, {transform_indices = @transform_1, window_bounds = array<i64: 16, 32>}, {pipeline_mode = #tpu.pipeline_mode<synchronous>, transform_indices = @transform_2, window_bounds = array<i64: 32, 128>}, {pipeline_mode = #tpu.pipeline_mode<synchronous>, transform_indices = @transform_3, window_bounds = array<i64: 1, 128>}, {pipeline_mode = #tpu.pipeline_mode<synchronous>, transform_indices = @transform_4, window_bounds = array<i64: 128, 32>}, {pipeline_mode = #tpu.pipeline_mode<synchronous>, transform_indices = @transform_5, window_bounds = array<i64: 1, 32>}, {pipeline_mode = #tpu.pipeline_mode<synchronous>, transform_indices = @transform_6, window_bounds = array<i64: 1, 32>}, {transform_indices = @transform_7, window_bounds = array<i64: 16, 32>}, {transform_indices = @transform_8, window_bounds = array<i64: 16, 32>}]} {
    %c0 = arith.constant 0 : index
    %c0_0 = arith.constant 0 : index
    %0 = vector.load %arg2[%c0, %c0_0] : memref<16x32xf32, #tpu.memory_space<vmem>>, vector<16x32xf32>
    %c0_1 = arith.constant 0 : index
    %c0_2 = arith.constant 0 : index
    %1 = vector.load %arg3[%c0_1, %c0_2] : memref<32x128xf32, #tpu.memory_space<vmem>>, vector<32x128xf32>
    %cst = arith.constant dense<0.000000e+00> : vector<16x128xf32>
    %2 = tpu.matmul %0, %1, %cst {dimension_numbers = #tpu.dot_dimension_numbers<[1], [0], [0], [1], [0, 0, 1, 1], [], []>} : vector<16x32xf32>, vector<32x128xf32>, vector<16x128xf32> -> vector<16x128xf32>
    %c0_3 = arith.constant 0 : index
    %c0_4 = arith.constant 0 : index
    %3 = vector.load %arg4[%c0_3, %c0_4] : memref<1x128xf32, #tpu.memory_space<vmem>>, vector<1x128xf32>
    %4 = vector.broadcast %3 : vector<1x128xf32> to vector<16x128xf32>
    %5 = arith.addf %2, %4 : vector<16x128xf32>
    %6 = arith.mulf %5, %5 : vector<16x128xf32>
    %7 = arith.mulf %5, %6 : vector<16x128xf32>
    %cst_5 = arith.constant 4.471500e-02 : f32
    %8 = vector.broadcast %cst_5 : f32 to vector<16x128xf32>
    %9 = arith.mulf %8, %7 : vector<16x128xf32>
    %10 = arith.addf %5, %9 : vector<16x128xf32>
    %cst_6 = arith.constant 0.797884583 : f32
    %11 = vector.broadcast %cst_6 : f32 to vector<16x128xf32>
    %12 = arith.mulf %11, %10 : vector<16x128xf32>
    %13 = math.tanh %12 : vector<16x128xf32>
    %cst_7 = arith.constant 1.000000e+00 : f32
    %14 = vector.broadcast %cst_7 : f32 to vector<16x128xf32>
    %15 = arith.addf %14, %13 : vector<16x128xf32>
    %cst_8 = arith.constant 5.000000e-01 : f32
    %16 = vector.broadcast %cst_8 : f32 to vector<16x128xf32>
    %17 = arith.mulf %16, %15 : vector<16x128xf32>
    %18 = arith.mulf %5, %17 : vector<16x128xf32>
    %c0_9 = arith.constant 0 : index
    %c0_10 = arith.constant 0 : index
    %19 = vector.load %arg5[%c0_9, %c0_10] : memref<128x32xf32, #tpu.memory_space<vmem>>, vector<128x32xf32>
    %cst_11 = arith.constant dense<0.000000e+00> : vector<16x32xf32>
    %20 = tpu.matmul %18, %19, %cst_11 {dimension_numbers = #tpu.dot_dimension_numbers<[1], [0], [0], [1], [0, 0, 1, 1], [], []>} : vector<16x128xf32>, vector<128x32xf32>, vector<16x32xf32> -> vector<16x32xf32>
    %c0_12 = arith.constant 0 : index
    %c0_13 = arith.constant 0 : index
    %21 = vector.load %arg6[%c0_12, %c0_13] : memref<1x32xf32, #tpu.memory_space<vmem>>, vector<1x32xf32>
    %c0_14 = arith.constant 0 : index
    %c0_15 = arith.constant 0 : index
    %22 = vector.load %arg7[%c0_14, %c0_15] : memref<1x32xf32, #tpu.memory_space<vmem>>, vector<1x32xf32>
    %c0_16 = arith.constant 0 : index
    %c0_17 = arith.constant 0 : index
    %23 = vector.load %arg8[%c0_16, %c0_17] : memref<16x32xf32, #tpu.memory_space<vmem>>, vector<16x32xf32>
    tpu.vector_store %arg8[%c0_16, %c0_17], %20 {strides = array<i32>} : memref<16x32xf32, #tpu.memory_space<vmem>>, vector<16x32xf32>,
    %24 = arith.addf %0, %20 : vector<16x32xf32>
    %cst_18 = arith.constant dense<0.000000e+00> : vector<16xf32>
    %25 = vector.multi_reduction <add>, %24, %cst_18 [1] : vector<16x32xf32> to vector<16xf32>
    %26 = vector.shape_cast %25 : vector<16xf32> to vector<16x1xf32>
    %cst_19 = arith.constant 3.200000e+01 : f32
    %27 = vector.broadcast %cst_19 : f32 to vector<16x1xf32>
    %28 = arith.divf %26, %27 : vector<16x1xf32>
    %29 = vector.broadcast %28 : vector<16x1xf32> to vector<16x32xf32>
    %30 = arith.subf %24, %29 : vector<16x32xf32>
    %31 = arith.mulf %30, %30 : vector<16x32xf32>
    %cst_20 = arith.constant dense<0.000000e+00> : vector<16xf32>
    %32 = vector.multi_reduction <add>, %31, %cst_20 [1] : vector<16x32xf32> to vector<16xf32>
    %33 = vector.shape_cast %32 : vector<16xf32> to vector<16x1xf32>
    %cst_21 = arith.constant 3.200000e+01 : f32
    %34 = vector.broadcast %cst_21 : f32 to vector<16x1xf32>
    %35 = arith.divf %33, %34 : vector<16x1xf32>
    %cst_22 = arith.constant 9.99999997E-7 : f32
    %36 = vector.broadcast %cst_22 : f32 to vector<16x1xf32>
    %37 = arith.addf %35, %36 : vector<16x1xf32>
    %38 = math.rsqrt %37 : vector<16x1xf32>
    %39 = vector.broadcast %38 : vector<16x1xf32> to vector<16x32xf32>
    %40 = arith.mulf %30, %39 : vector<16x32xf32>
    %41 = vector.broadcast %21 : vector<1x32xf32> to vector<16x32xf32>
    %42 = arith.mulf %40, %41 : vector<16x32xf32>
    %43 = vector.broadcast %22 : vector<1x32xf32> to vector<16x32xf32>
    %44 = arith.addf %42, %43 : vector<16x32xf32>
    %c0_23 = arith.constant 0 : index
    %c0_24 = arith.constant 0 : index
    %45 = vector.load %arg9[%c0_23, %c0_24] : memref<16x32xf32, #tpu.memory_space<vmem>>, vector<16x32xf32>
    tpu.vector_store %arg9[%c0_23, %c0_24], %44 {strides = array<i32>} : memref<16x32xf32, #tpu.memory_space<vmem>>, vector<16x32xf32>,
    return
  }
  func.func @transform_0(%arg0: i32) -> i32 {
    %c0_i32 = arith.constant 0 : i32
    %c0_i32_0 = arith.constant 0 : i32
    return %c0_i32 : i32
  }
  func.func @transform_1(%arg0: i32) -> (i32, i32) {
    %c0_i32 = arith.constant 0 : i32
    %c0_i32_0 = arith.constant 0 : i32
    return %arg0, %c0_i32 : i32, i32
  }
  func.func @transform_2(%arg0: i32) -> (i32, i32) {
    %c0_i32 = arith.constant 0 : i32
    %c0_i32_0 = arith.constant 0 : i32
    %c0_i32_1 = arith.constant 0 : i32
    return %c0_i32, %c0_i32_0 : i32, i32
  }
  func.func @transform_3(%arg0: i32) -> (i32, i32) {
    %c0_i32 = arith.constant 0 : i32
    %c0_i32_0 = arith.constant 0 : i32
    %c0_i32_1 = arith.constant 0 : i32
    return %c0_i32, %c0_i32_0 : i32, i32
  }
  func.func @transform_4(%arg0: i32) -> (i32, i32) {
    %c0_i32 = arith.constant 0 : i32
    %c0_i32_0 = arith.constant 0 : i32
    %c0_i32_1 = arith.constant 0 : i32
    return %c0_i32, %c0_i32_0 : i32, i32
  }
  func.func @transform_5(%arg0: i32) -> (i32, i32) {
    %c0_i32 = arith.constant 0 : i32
    %c0_i32_0 = arith.constant 0 : i32
    %c0_i32_1 = arith.constant 0 : i32
    return %c0_i32, %c0_i32_0 : i32, i32
  }
  func.func @transform_6(%arg0: i32) -> (i32, i32) {
    %c0_i32 = arith.constant 0 : i32
    %c0_i32_0 = arith.constant 0 : i32
    %c0_i32_1 = arith.constant 0 : i32
    return %c0_i32, %c0_i32_0 : i32, i32
  }
  func.func @transform_7(%arg0: i32) -> (i32, i32) {
    %c0_i32 = arith.constant 0 : i32
    %c0_i32_0 = arith.constant 0 : i32
    return %arg0, %c0_i32 : i32, i32
  }
  func.func @transform_8(%arg0: i32) -> (i32, i32) {
    %c0_i32 = arith.constant 0 : i32
    %c0_i32_0 = arith.constant 0 : i32
    return %arg0, %c0_i32 : i32, i32
  }
}

</mosaic_0001>

<llo_original>
// kernel: tpu_custom_call.1
$region0: #{tpu_custom_call.1}
  #allocation0 [shape = 'u32[]', space=smem, size = 0x4, offset = 0x4, fixed_abs, tag = 'smem constant byte address 0x4 - core index']
  #allocation1 [shape = 'u32[144,128]{1,0:T(1,128)}', space=vmem, size = 0x12000, scoped, tag = 'internal scratch']
  #allocation2 [shape = 's32[1]{0:T(128)S(6)}', space=smem, size = 0x200, scoped, tag = 'scoped memory for tpu_custom_call.1']
  %s0 = inlined_call_operand.<no memory space> [shape: s32[1], index: 0, kind: input, shape index: {}]
  %s1 = inlined_call_operand.vmem [shape: f32[16,32], index: 1, kind: input, shape index: {}]
  %s2 = inlined_call_operand.vmem [shape: f32[32,128], index: 2, kind: input, shape index: {}]
  %s3 = inlined_call_operand.vmem [shape: f32[1,128], index: 3, kind: input, shape index: {}]
  %s4 = inlined_call_operand.vmem [shape: f32[128,32], index: 4, kind: input, shape index: {}]
  %s5 = inlined_call_operand.vmem [shape: f32[1,32], index: 5, kind: input, shape index: {}]
  %s6 = inlined_call_operand.vmem [shape: f32[1,32], index: 6, kind: input, shape index: {}]
  %s7 = inlined_call_operand.hbm [shape: f32[16,32], index: 7, kind: output, shape index: {0}]
  %s8 = inlined_call_operand.hbm [shape: f32[16,32], index: 8, kind: output, shape index: {1}]
  %9 = xla_tuple %s7, %s8
  %s10 = sld [smem:[#allocation0]]
  $region46: #{tpu_custom_call.1} parent=0
    _
  %s12 = ssub.s32 1, %s10
  %s13 = scalar_select 0, %s12, %s10
  %14 = sst [smem:[#allocation2]] %s0
  $region1: #{tpu_custom_call.1} parent=0
    #allocation3 [shape = 'u8[8192]{0}', space=vmem, size = 0x2000, scoped, tag = 'output window, operand 0, single buffered']
    #allocation4 [shape = 's32[1]{0}', space=sflag, size = 0x4, scoped, tag = 'scoped memory for tpu_custom_call.1']
    #allocation5 [shape = 'u8[8192]{0}', space=vmem, size = 0x2000, scoped, tag = 'output window, operand 1, single buffered']
    #allocation6 [shape = 's32[1]{0}', space=sflag, size = 0x4, scoped, tag = 'scoped memory for tpu_custom_call.1']
    %15 = vsyncpa [#allocation4], 0
    %16 = vsyncpa [#allocation6], 0
    // Predicated region
    $region2: #{tpu_custom_call.1} parent=1 // pred_check
      _
    $region3: #{tpu_custom_call.1} parent=1 // pred_check_branch
      %18 = sbr.rel (0) target = $region5
    $region4: #{tpu_custom_call.1} parent=1 // pred_region
      _
    $region5: #{tpu_custom_call.1} parent=1 // pred_fallthru
      _
    // Predicated region
    $region6: #{tpu_custom_call.1} parent=1 // pred_check
      _
    $region7: #{tpu_custom_call.1} parent=1 // pred_check_branch
      %20 = sbr.rel (0) target = $region9
    $region8: #{tpu_custom_call.1} parent=1 // pred_region
      _
    $region9: #{tpu_custom_call.1} parent=1 // pred_fallthru
      _
    // Predicated region
    $region10: #{tpu_custom_call.1} parent=1 // pred_check
      _
    $region11: #{tpu_custom_call.1} parent=1 // pred_check_branch
      %22 = sbr.rel (0) target = $region13
    $region12: #{tpu_custom_call.1} parent=1 // pred_region
      _
    $region13: #{tpu_custom_call.1} parent=1 // pred_fallthru
      _
    // Predicated region
    $region14: #{tpu_custom_call.1} parent=1 // pred_check
      _
    $region15: #{tpu_custom_call.1} parent=1 // pred_check_branch
      %24 = sbr.rel (0) target = $region17
    $region16: #{tpu_custom_call.1} parent=1 // pred_region
      _
    $region17: #{tpu_custom_call.1} parent=1 // pred_fallthru
      _
    // Predicated region
    $region18: #{tpu_custom_call.1} parent=1 // pred_check
      _
    $region19: #{tpu_custom_call.1} parent=1 // pred_check_branch
      %26 = sbr.rel (0) target = $region21
    $region20: #{tpu_custom_call.1} parent=1 // pred_region
      _
    $region21: #{tpu_custom_call.1} parent=1 // pred_fallthru
      _
    // Predicated region
    $region22: #{tpu_custom_call.1} parent=1 // pred_check
      _
    $region23: #{tpu_custom_call.1} parent=1 // pred_check_branch
      %28 = sbr.rel (0) target = $region25
    $region24: #{tpu_custom_call.1} parent=1 // pred_region
      _
    $region25: #{tpu_custom_call.1} parent=1 // pred_fallthru
      _
    // Predicated region
    $region26: #{tpu_custom_call.1} parent=1 // pred_check
      _
    $region27: #{tpu_custom_call.1} parent=1 // pred_check_branch
      %30 = sbr.rel (0) target = $region29
    $region28: #{tpu_custom_call.1} parent=1 // pred_region
      _
    $region29: #{tpu_custom_call.1} parent=1 // pred_fallthru
      _
    %v31 = vld [vmem:[%s1] sm:$0xff]
    %v32 = vld [vmem:[%s1 + $0x8] sm:$0xff]
    %v33 = vld [vmem:[%s2] sm:$0xff]
    %v34 = vld [vmem:[%s2 + $0x8] sm:$0xff]
    %v35 = vld [vmem:[%s2 + $0x10] sm:$0xff]
    %v36 = vld [vmem:[%s2 + $0x18] sm:$0xff]
    %v37 = vld [vmem:[%s3] sm:$0x1]
    %v39 = vlaneseq
    %v40 = vshrl.u32 %v39, 7
    %v41 = vsub.s32 0, %v40
    %v42 = vrot.slane %v37, %v41
    %vm44 = vcmask 261120
    %v46 = vsel %vm44, %v31, 0
    %v49 = vsel %vm44, %v32, 0
    %51 = vmatprep.subr.mxu0 0.0
    %52 = vmatpush1.msra.mxu0 %v33
    %53 = vmatprep.subr.mxu0 0.0
    %54 = vmatpush1.msra.mxu0 %v34
    %55 = vmatprep.subr.mxu0 0.0
    %56 = vmatpush1.msra.mxu0 %v35
    %57 = vmatprep.subr.mxu0 0.0
    %58 = vmatpush1.msra.mxu0 %v36
    %59 = vmatprep.subr.mxu0 0.0
    %60 = vmatpush1.msra.mxu0 0.0
    %61 = vmatprep.subr.mxu0 0.0
    %62 = vmatpush1.msra.mxu0 0.0
    %63 = vmatprep.subr.mxu0 0.0
    %64 = vmatpush1.msra.mxu0 0.0
    %65 = vmatprep.subr.mxu0 0.0
    %66 = vmatpush1.msra.mxu0 0.0
    %67 = vmatprep.subr.mxu0 0.0
    %68 = vmatpush1.msra.mxu0 0.0
    %69 = vmatprep.subr.mxu0 0.0
    %70 = vmatpush1.msra.mxu0 0.0
    %71 = vmatprep.subr.mxu0 0.0
    %72 = vmatpush1.msra.mxu0 0.0
    %73 = vmatprep.subr.mxu0 0.0
    %74 = vmatpush1.msra.mxu0 0.0
    %75 = vmatprep.subr.mxu0 0.0
    %76 = vmatpush1.msra.mxu0 0.0
    %77 = vmatprep.subr.mxu0 0.0
    %78 = vmatpush1.msra.mxu0 0.0
    %79 = vmatprep.subr.mxu0 0.0
    %80 = vmatpush1.msra.mxu0 0.0
    %81 = vmatprep.subr.mxu0 0.0
    %82 = vmatpush1.msra.mxu0 0.0
    %83 = vmatprep.subr.mxu0 0.0
    %84 = vmatpush1.msra.mxu0 0.0
    %85 = vmatprep.subr.mxu0 0.0
    %86 = vmatpush1.msra.mxu0 0.0
    %87 = vmatprep.subr.mxu0 0.0
    %88 = vmatpush1.msra.mxu0 0.0
    %89 = vmatprep.subr.mxu0 0.0
    %90 = vmatpush1.msra.mxu0 0.0
    %91 = vmatprep.subr.mxu0 0.0
    %92 = vmatpush1.msra.mxu0 0.0
    %93 = vmatprep.subr.mxu0 0.0
    %94 = vmatpush1.msra.mxu0 0.0
    %95 = vmatprep.subr.mxu0 0.0
    %96 = vmatpush1.msra.mxu0 0.0
    %97 = vmatprep.subr.mxu0 0.0
    %98 = vmatpush1.msra.mxu0 0.0
    %99 = vmatprep.subr.mxu0 0.0
    %100 = vmatpush1.msra.mxu0 0.0
    %101 = vmatprep.subr.mxu0 0.0
    %102 = vmatpush1.msra.mxu0 0.0
    %103 = vmatprep.subr.mxu0 0.0
    %104 = vmatpush1.msra.mxu0 0.0
    %105 = vmatprep.subr.mxu0 0.0
    %106 = vmatpush1.msra.mxu0 0.0
    %107 = vmatprep.subr.mxu0 0.0
    %108 = vmatpush1.msra.mxu0 0.0
    %109 = vmatprep.subr.mxu0 0.0
    %110 = vmatpush1.msra.mxu0 0.0
    %111 = vmatprep.subr.mxu0 0.0
    %112 = vmatpush1.msra.mxu0 0.0
    %113 = vmatprep.subr.mxu0 0.0
    %114 = vmatpush1.msra.mxu0 0.0
    %115 = vmatprep.mubr.f32.mxu0 0.0
    %116 = vmatmul.mubr.f32.gmra.mrb[0].mxu0 %v46
    %v117 = vpop.f32.mrb[0].mxu0
    %v118 = vadd.f32 %v42, %v117
    %v119 = vpop.f32.mrb[0].mxu0
    %120 = vmatprep.mubr.f32.mxu0 0.0
    %121 = vmatmul.mubr.f32.gmra.mrb[0].mxu0 %v49
    %v122 = vpop.f32.mrb[0].mxu0
    %v123 = vadd.f32 %v42, %v122
    %v124 = vpop.f32.mrb[0].mxu0
    %125 = vdwg.mxu0
    %v126 = vmul.f32 %v118, %v118
    %v127 = vmul.f32 %v123, %v123
    %v128 = vmul.f32 %v118, %v126
    %v129 = vmul.f32 %v123, %v127
    %v130 = vmul.f32 %v128, 0.044715
    %v131 = vmul.f32 %v129, 0.044715
    %v132 = vadd.f32 %v118, %v130
    %v133 = vadd.f32 %v123, %v131
    %v134 = vmul.f32 %v132, 0.7978846
    %v135 = vmul.f32 %v133, 0.7978846
    %v136 = vtanh.pop %v134
    %v137 = vtanh.pop %v135
    %v138 = vadd.f32 %v136, 1.0
    %v139 = vadd.f32 %v137, 1.0
    %v140 = vmul.f32 %v138, 0.5
    %v141 = vmul.f32 %v139, 0.5
    %v142 = vmul.f32 %v118, %v140
    %v143 = vmul.f32 %v123, %v141
    %v144 = vld [vmem:[%s4] sm:$0xff]
    %v145 = vld [vmem:[%s4 + $0x8] sm:$0xff]
    %v146 = vld [vmem:[%s4 + $0x10] sm:$0xff]
    %v147 = vld [vmem:[%s4 + $0x18] sm:$0xff]
    %v148 = vld [vmem:[%s4 + $0x20] sm:$0xff]
    %v149 = vld [vmem:[%s4 + $0x28] sm:$0xff]
    %v150 = vld [vmem:[%s4 + $0x30] sm:$0xff]
    %v151 = vld [vmem:[%s4 + $0x38] sm:$0xff]
    %v152 = vld [vmem:[%s4 + $0x40] sm:$0xff]
    %v153 = vld [vmem:[%s4 + $0x48] sm:$0xff]
    %v154 = vld [vmem:[%s4 + $0x50] sm:$0xff]
    %v155 = vld [vmem:[%s4 + $0x58] sm:$0xff]
    %v156 = vld [vmem:[%s4 + $0x60] sm:$0xff]
    %v157 = vld [vmem:[%s4 + $0x68] sm:$0xff]
    %v158 = vld [vmem:[%s4 + $0x70] sm:$0xff]
    %v159 = vld [vmem:[%s4 + $0x78] sm:$0xff]
    %160 = vmatprep.subr.mxu0 0.0
    %161 = vmatpush1.msra.mxu0 %v144
    %162 = vmatprep.subr.mxu0 0.0
    %163 = vmatpush1.msra.mxu0 %v145
    %164 = vmatprep.subr.mxu0 0.0
    %165 = vmatpush1.msra.mxu0 %v146
    %166 = vmatprep.subr.mxu0 0.0
    %167 = vmatpush1.msra.mxu0 %v147
    %168 = vmatprep.subr.mxu0 0.0
    %169 = vmatpush1.msra.mxu0 %v148
    %170 = vmatprep.subr.mxu0 0.0
    %171 = vmatpush1.msra.mxu0 %v149
    %172 = vmatprep.subr.mxu0 0.0
    %173 = vmatpush1.msra.mxu0 %v150
    %174 = vmatprep.subr.mxu0 0.0
    %175 = vmatpush1.msra.mxu0 %v151
    %176 = vmatprep.subr.mxu0 0.0
    %177 = vmatpush1.msra.mxu0 %v152
    %178 = vmatprep.subr.mxu0 0.0
    %179 = vmatpush1.msra.mxu0 %v153
    %180 = vmatprep.subr.mxu0 0.0
    %181 = vmatpush1.msra.mxu0 %v154
    %182 = vmatprep.subr.mxu0 0.0
    %183 = vmatpush1.msra.mxu0 %v155
    %184 = vmatprep.subr.mxu0 0.0
    %185 = vmatpush1.msra.mxu0 %v156
    %186 = vmatprep.subr.mxu0 0.0
    %187 = vmatpush1.msra.mxu0 %v157
    %188 = vmatprep.subr.mxu0 0.0
    %189 = vmatpush1.msra.mxu0 %v158
    %190 = vmatprep.subr.mxu0 0.0
    %191 = vmatpush1.msra.mxu0 %v159
    %192 = vmatprep.subr.mxu0 0.0
    %193 = vmatpush1.msra.mxu0 0.0
    %194 = vmatprep.subr.mxu0 0.0
    %195 = vmatpush1.msra.mxu0 0.0
    %196 = vmatprep.subr.mxu0 0.0
    %197 = vmatpush1.msra.mxu0 0.0
    %198 = vmatprep.subr.mxu0 0.0
    %199 = vmatpush1.msra.mxu0 0.0
    %200 = vmatprep.subr.mxu0 0.0
    %201 = vmatpush1.msra.mxu0 0.0
    %202 = vmatprep.subr.mxu0 0.0
    %203 = vmatpush1.msra.mxu0 0.0
    %204 = vmatprep.subr.mxu0 0.0
    %205 = vmatpush1.msra.mxu0 0.0
    %206 = vmatprep.subr.mxu0 0.0
    %207 = vmatpush1.msra.mxu0 0.0
    %208 = vmatprep.subr.mxu0 0.0
    %209 = vmatpush1.msra.mxu0 0.0
    %210 = vmatprep.subr.mxu0 0.0
    %211 = vmatpush1.msra.mxu0 0.0
    %212 = vmatprep.subr.mxu0 0.0
    %213 = vmatpush1.msra.mxu0 0.0
    %214 = vmatprep.subr.mxu0 0.0
    %215 = vmatpush1.msra.mxu0 0.0
    %216 = vmatprep.subr.mxu0 0.0
    %217 = vmatpush1.msra.mxu0 0.0
    %218 = vmatprep.subr.mxu0 0.0
    %219 = vmatpush1.msra.mxu0 0.0
    %220 = vmatprep.subr.mxu0 0.0
    %221 = vmatpush1.msra.mxu0 0.0
    %222 = vmatprep.subr.mxu0 0.0
    %223 = vmatpush1.msra.mxu0 0.0
    %224 = vmatprep.mubr.f32.mxu0 0.0
    %225 = vmatmul.mubr.f32.gmra.mrb[0].mxu0 %v142
    %v226 = vpop.f32.mrb[0].mxu0
    %v227 = vadd.f32 0.0, %v226
    %v228 = vpop.f32.mrb[0].mxu0
    %229 = vmatprep.mubr.f32.mxu0 0.0
    %230 = vmatmul.mubr.f32.gmra.mrb[0].mxu0 %v143
    %v231 = vpop.f32.mrb[0].mxu0
    %v232 = vadd.f32 0.0, %v231
    %v233 = vpop.f32.mrb[0].mxu0
    %234 = vdwg.mxu0
    %v235 = vld [vmem:[%s5] sm:$0x1]
    %v236 = vld [vmem:[%s6] sm:$0x1]
    %237 = vst.msk [vmem:[#allocation3] sm:$0xff] %vm44, %v227
    %238 = vst.msk [vmem:[#allocation3 + $0x8] sm:$0xff] %vm44, %v232
    %v239 = vadd.f32 %v31, %v227
    %v240 = vadd.f32 %v32, %v232
    %v241 = vsel %vm44, %v239, 0.0
    %242 = vadd.xlane.f32.xlu0 %v241
    %v243 = vpop.xlane.xlu0 %242
    %v244 = vsel %vm44, %v240, 0.0
    %245 = vadd.xlane.f32.xlu0 %v244
    %v246 = vpop.xlane.xlu0 %245
    %v247 = vrcp.pop 32.0
    %v248 = vmul.f32 %v243, %v247
    %v249 = vmul.f32 %v246, %v247
    %v250 = vsub.f32 %v239, %v248
    %v251 = vsub.f32 %v240, %v249
    %v252 = vmul.f32 %v250, %v250
    %v253 = vmul.f32 %v251, %v251
    %v254 = vsel %vm44, %v252, 0.0
    %255 = vadd.xlane.f32.xlu0 %v254
    %v256 = vpop.xlane.xlu0 %255
    %v257 = vsel %vm44, %v253, 0.0
    %258 = vadd.xlane.f32.xlu0 %v257
    %v259 = vpop.xlane.xlu0 %258
    %v260 = vmul.f32 %v256, %v247
    %v261 = vmul.f32 %v259, %v247
    %v262 = vadd.f32 %v260, 1e-06
    %v263 = vadd.f32 %v261, 1e-06
    %v264 = vrsqrt.pop %v262
    %v265 = vrsqrt.pop %v263
    %v266 = vmul.f32 %v250, %v264
    %v267 = vmul.f32 %v251, %v265
    %v269 = vlaneseq
    %v270 = vshrl.u32 %v269, 7
    %v271 = vsub.s32 0, %v270
    %v272 = vrot.slane %v235, %v271
    %v274 = vmul.f32 %v266, %v272
    %v275 = vmul.f32 %v267, %v272
    %v277 = vlaneseq
    %v278 = vshrl.u32 %v277, 7
    %v279 = vsub.s32 0, %v278
    %v280 = vrot.slane %v236, %v279
    %v282 = vadd.f32 %v274, %v280
    %v283 = vadd.f32 %v275, %v280
    %284 = vst.msk [vmem:[#allocation5] sm:$0xff] %vm44, %v282
    %285 = vst.msk [vmem:[#allocation5 + $0x8] sm:$0xff] %vm44, %v283
    // Predicated region
    $region30: #{tpu_custom_call.1} parent=1 // pred_check
      _
    $region31: #{tpu_custom_call.1} parent=1 // pred_check_branch
      %287 = sbr.rel (0) target = $region33
    $region32: #{tpu_custom_call.1} parent=1 // pred_region
      %s289 = ssub.s32 256, 256
      %290 = vsyncadd [#allocation4], %s289
      %s291 = sshll.u32 [#allocation3], 4
      %s292 = int_to_ptr.vmem [resolvable:$true] %s291
      %297 = dma.vmem_to_hbm [thread:$0]  %s292, 256, %s7, [#allocation4], 128, 128, 8
    $region33: #{tpu_custom_call.1} parent=1 // pred_fallthru
      _
    // Predicated region
    $region34: #{tpu_custom_call.1} parent=1 // pred_check
      _
    $region35: #{tpu_custom_call.1} parent=1 // pred_check_branch
      %299 = sbr.rel (0) target = $region37
    $region36: #{tpu_custom_call.1} parent=1 // pred_region
      %s301 = ssub.s32 256, 256
      %302 = vsyncadd [#allocation6], %s301
      %s303 = sshll.u32 [#allocation5], 4
      %s304 = int_to_ptr.vmem [resolvable:$true] %s303
      %309 = dma.vmem_to_hbm [thread:$0]  %s304, 256, %s8, [#allocation6], 128, 128, 8
    $region37: #{tpu_custom_call.1} parent=1 // pred_fallthru
      _
    // Predicated region
    $region38: #{tpu_custom_call.1} parent=1 // pred_check
      _
    $region39: #{tpu_custom_call.1} parent=1 // pred_check_branch
      %311 = sbr.rel (0) target = $region41
    $region40: #{tpu_custom_call.1} parent=1 // pred_region
      %312 = dma.done [#allocation4], 256
    $region41: #{tpu_custom_call.1} parent=1 // pred_fallthru
      _
    // Predicated region
    $region42: #{tpu_custom_call.1} parent=1 // pred_check
      _
    $region43: #{tpu_custom_call.1} parent=1 // pred_check_branch
      %314 = sbr.rel (0) target = $region45
    $region44: #{tpu_custom_call.1} parent=1 // pred_region
      %315 = dma.done [#allocation6], 256
    $region45: #{tpu_custom_call.1} parent=1 // pred_fallthru
      _
    %316 = vsyncpa [#allocation4], 1
    %317 = vsyncpa [#allocation6], 1

</llo_original>
